<compile_context>
chip_gen: v7x
topology: tpu7x:2x2x1
jax: 0.10.0
libtpu: 0.0.40
codegen_flags: <defaults>
</compile_context>

<pallas_src>
import jax
import jax.numpy as jnp
from jax.experimental import pallas as pl
from jax.experimental.pallas import tpu as pltpu

# Below this size a copy kernel is pure launch/DMA overhead: just return x.
_PALLAS_MIN_BYTES = 4 << 20


def _identity_kernel(x_ref, o_ref):
    # Pure pass-through: one full-width VMEM load + store per tile (no compute).
    o_ref[...] = x_ref[...]


def _best_lane(total):
    # Widest lane-dense (multiple-of-128) last dim that divides the flattened
    # size: full-width vst instead of masked partial stores, fewer grid steps.
    for cand in (32768, 16384, 8192, 4096, 2048, 1024, 512, 256, 128):
        if total % cand == 0:
            return cand
    return None


def _vmem_budget_bytes():
    # Generation-aware VMEM budget (v5e/v6e: 128 MiB; v7x: 64 MiB per TC).
    try:
        vmem = int(pltpu.get_tpu_info().vmem_capacity_bytes)
    except Exception:
        vmem = 64 << 20  # assume the smallest (v7x) if the query fails
    return int(vmem * 0.75)  # ~25% headroom for the compiler's own scratch


def _choose_tm(rows, lane, itemsize):
    # Default double buffering: 2 input + 2 output live tiles must fit budget.
    per_row = lane * itemsize
    max_rows = _vmem_budget_bytes() // (4 * per_row)
    max_rows = max(8, (max_rows // 8) * 8)  # keep the (8, 128) tiling rule
    if max_rows >= rows:
        return rows  # whole array in a single block (block == full dim is OK)
    return min(max_rows, 4096)


def _pallas_identity_copy(x):
    """Lane-dense, tiled HBM->VMEM->HBM identity copy (explicit materialize)."""
    total = x.size
    lane = _best_lane(total)
    if lane is None or total == 0:
        # Non-lane-dense element count: a copy kernel would only add masked
        # stores and extra HBM traffic; the identity result is just x.
        return x

    rows = total // lane
    x2 = x.reshape(rows, lane)
    itemsize = x2.dtype.itemsize
    tm = _choose_tm(rows, lane, itemsize)
    grid = (pl.cdiv(rows, tm),)
    block_bytes = tm * lane * itemsize

    y2 = pl.pallas_call(
        _identity_kernel,
        out_shape=jax.ShapeDtypeStruct((rows, lane), x2.dtype),
        grid=grid,
        in_specs=[pl.BlockSpec((tm, lane), lambda i: (i, 0))],
        out_specs=pl.BlockSpec((tm, lane), lambda i: (i, 0)),
        # No input_output_aliases here: without jit+donation the alias does not
        # elide the output buffer and makes reading x afterwards fragile.
        compiler_params=pltpu.CompilerParams(
            # Independent tiles: lets Mosaic shard the copy across both TCs on
            # v7x; neutral on single-TC v5e/v6e. Default double buffering only
            # (pure HBM streaming - extra buffers add VMEM pressure, no BW).
            dimension_semantics=("parallel",),
            # Explicit limit so 8-12 MiB blocks are not rejected by the
            # 16/32 MiB scoped-VMEM defaults; sized to the live buffers.
            vmem_limit_bytes=min(
                _vmem_budget_bytes(), max(4 * block_bytes, 8 << 20)
            ),
        ),
    )(x2)
    return y2.reshape(x.shape)


def base_model_forward(x, *, force_pallas=False):
    """Pallas stand-in for BaseModel.forward (abstract in PyTorch)."""
    if not force_pallas and x.size * x.dtype.itemsize < _PALLAS_MIN_BYTES:
        # Highest-value optimization: the identity needs no kernel at all.
        return x
    return _pallas_identity_copy(x)


if __name__ == "__main__":
    key = jax.random.PRNGKey(0)
    # NCHW input consistent with a vision-style subclass of BaseModel.
    x = jax.random.normal(key, (2, 4, 16, 16), dtype=jnp.float32)

    # Normal path: small input -> short-circuit, zero HBM traffic.
    y = base_model_forward(x)
    jax.block_until_ready(y)
    assert y.shape == x.shape and y.dtype == x.dtype
    assert bool(jnp.allclose(y, x))

    # Forced Pallas path: exercises the tiled lane-dense copy kernel on TPU.
    y_k = base_model_forward(x, force_pallas=True)
    jax.block_until_ready(y_k)
    assert y_k.shape == x.shape and y_k.dtype == x.dtype
    assert bool(jnp.allclose(y_k, x))

    print("KERNEL_OK")
</pallas_src>

<mosaic_0001>
module attributes {stable_mosaic.version = 11 : i64} {
  func.func @_identity_kernel(%arg0: i32, %arg1: memref<1x2048xf32, #tpu.memory_space<vmem>>, %arg2: memref<1x2048xf32, #tpu.memory_space<vmem>>) attributes {dimension_semantics = [#tpu.dimension_semantics<parallel>], iteration_bounds = array<i64: 1>, scalar_prefetch = 0 : i64, scratch_operands = 0 : i64, tpu.core_type = #tpu.core_type<tc>, window_params = [{transform_indices = @transform_0, window_bounds = array<i64: 1, 2048>}, {transform_indices = @transform_1, window_bounds = array<i64: 1, 2048>}]} {
    %c0 = arith.constant 0 : index
    %c0_0 = arith.constant 0 : index
    %0 = vector.load %arg1[%c0, %c0_0] : memref<1x2048xf32, #tpu.memory_space<vmem>>, vector<1x2048xf32>
    %c0_1 = arith.constant 0 : index
    %c0_2 = arith.constant 0 : index
    %1 = vector.load %arg2[%c0_1, %c0_2] : memref<1x2048xf32, #tpu.memory_space<vmem>>, vector<1x2048xf32>
    tpu.vector_store %arg2[%c0_1, %c0_2], %0 {strides = array<i32>} : memref<1x2048xf32, #tpu.memory_space<vmem>>, vector<1x2048xf32>,
    return
  }
  func.func @transform_0(%arg0: i32) -> (i32, i32) {
    %c0_i32 = arith.constant 0 : i32
    %c0_i32_0 = arith.constant 0 : i32
    return %arg0, %c0_i32 : i32, i32
  }
  func.func @transform_1(%arg0: i32) -> (i32, i32) {
    %c0_i32 = arith.constant 0 : i32
    %c0_i32_0 = arith.constant 0 : i32
    return %arg0, %c0_i32 : i32, i32
  }
}

</mosaic_0001>

<llo_original>
// kernel: tpu_custom_call.1
$region0: #{tpu_custom_call.1}
  #allocation0 [shape = 'u32[]', space=smem, size = 0x4, offset = 0x4, fixed_abs, tag = 'smem constant byte address 0x4 - core index']
  #allocation1 [shape = 'u32[144,128]{1,0:T(1,128)}', space=vmem, size = 0x12000, scoped, tag = 'internal scratch']
  %s0 = inlined_call_operand.hbm [shape: f32[1,2048], index: 0, kind: input, shape index: {}]
  %s1 = inlined_call_operand.hbm [shape: f32[1,2048], index: 1, kind: output, shape index: {}]
  %s2 = sld [smem:[#allocation0]]
  $region18: #{tpu_custom_call.1} parent=0
    _
  %s4 = ssub.s32 1, %s2
  %s5 = scalar_select 0, %s4, %s2
  $region1: #{tpu_custom_call.1} parent=0
    #allocation2 [shape = 'u8[8192]{0}', space=vmem, size = 0x2000, scoped, tag = 'input window, operand 0, single buffered']
    #allocation3 [shape = 's32[1]{0}', space=sflag, size = 0x4, scoped, tag = 'scoped memory for tpu_custom_call.1']
    #allocation4 [shape = 's32[1]{0}', space=sflag, size = 0x4, scoped, tag = 'scoped memory for tpu_custom_call.1']
    #allocation5 [shape = 'u8[8192]{0}', space=vmem, size = 0x2000, scoped, tag = 'output window, operand 0, single buffered']
    %6 = vsyncpa [#allocation3], 0
    %7 = vsyncpa [#allocation4], 0
    // Predicated region
    $region2: #{tpu_custom_call.1} parent=1 // pred_check
      _
    $region3: #{tpu_custom_call.1} parent=1 // pred_check_branch
      %9 = sbr.rel (0) target = $region5
    $region4: #{tpu_custom_call.1} parent=1 // pred_region
      %s11 = ssub.s32 256, 256
      %12 = vsyncadd [#allocation3], %s11
      %s14 = sshll.u32 [#allocation2], 4
      %s15 = int_to_ptr.vmem [resolvable:$true] %s14
      %17 = dma.hbm_to_vmem [thread:$0]  %s0, 256, %s15, [#allocation3]
    $region5: #{tpu_custom_call.1} parent=1 // pred_fallthru
      _
    // Predicated region
    $region6: #{tpu_custom_call.1} parent=1 // pred_check
      _
    $region7: #{tpu_custom_call.1} parent=1 // pred_check_branch
      %19 = sbr.rel (0) target = $region9
    $region8: #{tpu_custom_call.1} parent=1 // pred_region
      %20 = dma.done [#allocation3], 256
    $region9: #{tpu_custom_call.1} parent=1 // pred_fallthru
      _
    %v21 = vld [vmem:[#allocation2] sm:$0xff]
    %v22 = vld [vmem:[#allocation2 + $0x8] sm:$0xff]
    %23 = vst [vmem:[#allocation5] sm:$0xff] %v21
    %24 = vst [vmem:[#allocation5 + $0x8] sm:$0xff] %v22
    // Predicated region
    $region10: #{tpu_custom_call.1} parent=1 // pred_check
      _
    $region11: #{tpu_custom_call.1} parent=1 // pred_check_branch
      %26 = sbr.rel (0) target = $region13
    $region12: #{tpu_custom_call.1} parent=1 // pred_region
      %s28 = ssub.s32 256, 256
      %29 = vsyncadd [#allocation4], %s28
      %s31 = sshll.u32 [#allocation5], 4
      %s32 = int_to_ptr.vmem [resolvable:$true] %s31
      %34 = dma.vmem_to_hbm [thread:$0]  %s32, 256, %s1, [#allocation4]
    $region13: #{tpu_custom_call.1} parent=1 // pred_fallthru
      _
    // Predicated region
    $region14: #{tpu_custom_call.1} parent=1 // pred_check
      _
    $region15: #{tpu_custom_call.1} parent=1 // pred_check_branch
      %36 = sbr.rel (0) target = $region17
    $region16: #{tpu_custom_call.1} parent=1 // pred_region
      %37 = dma.done [#allocation4], 256
    $region17: #{tpu_custom_call.1} parent=1 // pred_fallthru
      _
    %38 = vsyncpa [#allocation3], 1
    %39 = vsyncpa [#allocation4], 1

</llo_original>
